<compile_context>
chip_gen: v7x
topology: tpu7x:2x2x1
jax: 0.10.0
libtpu: 0.0.40
codegen_flags: <defaults>
</compile_context>

<pallas_src>
import jax
import jax.numpy as jnp
from jax.experimental import pallas as pl
from jax.experimental.pallas import tpu as pltpu


_SUBLANE = 8                              # f32 sublane tiling
_LANE = 128                               # lane tiling
_ILP = 8                                  # independent vmax chains per tile reduce
_DEFAULT_TILE_BYTES = 8 * 1024 * 1024     # ~8 MiB input tile (16 MiB double-buffered)
_MAX_SLICE_BYTES = 12 * 1024 * 1024       # largest single (1, d1, d2) slice tiled directly
_VMEM_LIMIT_BYTES = 32 * 1024 * 1024      # explicit scoped-VMEM limit (safe v5e/v6e/v7x)


def _round_up(x: int, m: int) -> int:
    return -(-x // m) * m


def reduce_amax_all_dims(a: jax.Array, *, max_tile_bytes: int = _DEFAULT_TILE_BYTES) -> jax.Array:
    """Pallas TPU implementation of torch.ops.aten.amax(a, dim=()) (global max)."""
    assert a.ndim == 3, "module expects a rank-3 tensor"
    d0, d1, d2 = (int(s) for s in a.shape)
    total = d0 * d1 * d2
    assert total > 0, "amax of an empty tensor is undefined"
    dtype = a.dtype

    if jnp.issubdtype(dtype, jnp.floating):
        init_val = -jnp.inf
    elif jnp.issubdtype(dtype, jnp.integer):
        init_val = int(jnp.iinfo(dtype).min)
    else:
        # TODO(synk): bool inputs — no clean identity/ordering in this kernel; use XLA reduce.
        return jnp.max(a)

    # VMEM footprint of one (1, d1, d2) slice in the native (8, 128)-tiled layout.
    slice_bytes = _round_up(d1, _SUBLANE) * _round_up(d2, _LANE) * dtype.itemsize
    if slice_bytes > _MAX_SLICE_BYTES:
        # TODO(synk): tile the inner (d1, d2) dims (needs in-kernel edge masking) when a
        # single slice does not fit the VMEM budget; fall back to the XLA reduce here.
        return jnp.max(a)

    # Tile over dim 0 only; keep full tiles a multiple of _ILP so they always hit
    # the 8-way ILP reduce path.  The (possibly ragged) tail is handled in-kernel.
    td0 = max(1, min(d0, max_tile_bytes // slice_bytes))
    if td0 >= _ILP:
        td0 -= td0 % _ILP
    tiles = -(-d0 // td0)
    tail = d0 - (tiles - 1) * td0          # valid rows in the last (possibly partial) block

    def kernel(x_ref, o_ref):
        i = pl.program_id(0)

        @pl.when(i == 0)
        def _init():
            o_ref[...] = jnp.full(o_ref.shape, init_val, o_ref.dtype)

        def accumulate(rows):
            # `rows` is a static Python int, so all slices below are static:
            # the last (boundary) block's out-of-range rows are never touched.
            main = (rows // _ILP) * _ILP
            if main >= 2 * _ILP:
                # Two-stage reduce: _ILP independent vmax chains of length rows/_ILP,
                # then one short combine -> keeps HBM (not VALU latency) the bottleneck.
                x = x_ref[:main].reshape(main // _ILP, _ILP, d1, d2)
                tile_max = jnp.max(jnp.max(x, axis=0), axis=0, keepdims=True)
                if rows > main:
                    rest = jnp.max(x_ref[main:rows], axis=0, keepdims=True)
                    tile_max = jnp.maximum(tile_max, rest)
            else:
                tile_max = jnp.max(x_ref[:rows], axis=0, keepdims=True)
            o_ref[...] = jnp.maximum(o_ref[...], tile_max)   # resident (1, d1, d2) acc

        if tail == td0:                     # dim 0 divides evenly: one uniform path
            accumulate(td0)
        else:
            @pl.when(i < tiles - 1)
            def _full_tiles():
                accumulate(td0)

            @pl.when(i == tiles - 1)
            def _tail_tile():
                accumulate(tail)

    partials = pl.pallas_call(
        kernel,
        out_shape=jax.ShapeDtypeStruct((1, d1, d2), dtype),
        grid_spec=pltpu.PrefetchScalarGridSpec(
            num_scalar_prefetch=0,
            grid=(tiles,),
            in_specs=[pl.BlockSpec((td0, d1, d2), lambda i: (i, 0, 0))],
            out_specs=pl.BlockSpec((1, d1, d2), lambda i: (0, 0, 0)),
        ),
        compiler_params=pltpu.CompilerParams(
            dimension_semantics=("arbitrary",),
            vmem_limit_bytes=_VMEM_LIMIT_BYTES,
        ),
        cost_estimate=pl.CostEstimate(
            flops=total,
            transcendentals=0,
            bytes_accessed=total * dtype.itemsize + d1 * d2 * dtype.itemsize,
        ),
    )(a)

    # Tiny final cross-lane reduce of the single resident block (few KiB) in XLA.
    return jnp.max(partials)


if __name__ == "__main__":
    key = jax.random.PRNGKey(0)

    # Small rank-3 float32 inputs consistent with the ([-1, -1, -1], float32) spec.
    #  (3, 7, 19)   : ragged lanes/sublanes, single tile
    #  (4, 32, 128) : aligned last dims, single tile
    #  (37, 8, 128) : forced small tile -> multi-step grid + ragged dim-0 tail + ILP path
    cases = [
        ((3, 7, 19), {}),
        ((4, 32, 128), {}),
        ((37, 8, 128), {"max_tile_bytes": 64 * 1024}),
    ]
    for shape, kwargs in cases:
        key, sub = jax.random.split(key)
        a = jax.random.normal(sub, shape, dtype=jnp.float32)
        out = reduce_amax_all_dims(a, **kwargs)
        out = jax.block_until_ready(out)

        ref = jnp.max(a)                      # reference: global amax
        assert out.shape == ()                # 0-dim scalar, like torch amax(dim=())
        assert out.dtype == a.dtype
        assert jnp.allclose(out, ref), (shape, out, ref)

    print("KERNEL_OK")
</pallas_src>

<mosaic_0001>
module attributes {stable_mosaic.version = 11 : i64} {
  func.func @kernel(%arg0: i32, %arg1: memref<3x7x19xf32, #tpu.memory_space<vmem>>, %arg2: memref<1x7x19xf32, #tpu.memory_space<vmem>>) attributes {dimension_semantics = [#tpu.dimension_semantics<arbitrary>], iteration_bounds = array<i64: 1>, scalar_prefetch = 0 : i64, scratch_operands = 0 : i64, tpu.core_type = #tpu.core_type<tc>, window_params = [{transform_indices = @transform_0, window_bounds = array<i64: 3, 7, 19>}, {pipeline_mode = #tpu.pipeline_mode<synchronous>, transform_indices = @transform_1, window_bounds = array<i64: 1, 7, 19>}]} {
    %c0_i32 = arith.constant 0 : i32
    %0 = arith.cmpi eq, %arg0, %c0_i32 : i32
    %1 = arith.extui %0 : i1 to i32
    %c0_i32_0 = arith.constant 0 : i32
    %2 = arith.cmpi ne, %1, %c0_i32_0 : i32
    scf.if %2 {
      %cst_9 = arith.constant 0xFF800000 : f32
      %9 = vector.broadcast %cst_9 : f32 to vector<1x7x19xf32>
      %c0_10 = arith.constant 0 : index
      %c0_11 = arith.constant 0 : index
      %c0_12 = arith.constant 0 : index
      %10 = vector.load %arg2[%c0_10, %c0_11, %c0_12] : memref<1x7x19xf32, #tpu.memory_space<vmem>>, vector<1x7x19xf32>
      tpu.vector_store %arg2[%c0_10, %c0_11, %c0_12], %9 {strides = array<i32>} : memref<1x7x19xf32, #tpu.memory_space<vmem>>, vector<1x7x19xf32>,
    } else {
    }
    %c0 = arith.constant 0 : index
    %c0_1 = arith.constant 0 : index
    %c0_2 = arith.constant 0 : index
    %3 = vector.load %arg1[%c0, %c0_1, %c0_2] : memref<3x7x19xf32, #tpu.memory_space<vmem>>, vector<3x7x19xf32>
    %cst = arith.constant dense<0xFF800000> : vector<7x19xf32>
    %4 = vector.multi_reduction <maximumf>, %3, %cst [0] : vector<3x7x19xf32> to vector<7x19xf32>
    %5 = vector.shape_cast %4 : vector<7x19xf32> to vector<1x7x19xf32>
    %c0_3 = arith.constant 0 : index
    %c0_4 = arith.constant 0 : index
    %c0_5 = arith.constant 0 : index
    %6 = vector.load %arg2[%c0_3, %c0_4, %c0_5] : memref<1x7x19xf32, #tpu.memory_space<vmem>>, vector<1x7x19xf32>
    %7 = arith.maximumf %6, %5 : vector<1x7x19xf32>
    %c0_6 = arith.constant 0 : index
    %c0_7 = arith.constant 0 : index
    %c0_8 = arith.constant 0 : index
    %8 = vector.load %arg2[%c0_6, %c0_7, %c0_8] : memref<1x7x19xf32, #tpu.memory_space<vmem>>, vector<1x7x19xf32>
    tpu.vector_store %arg2[%c0_6, %c0_7, %c0_8], %7 {strides = array<i32>} : memref<1x7x19xf32, #tpu.memory_space<vmem>>, vector<1x7x19xf32>,
    return
  }
  func.func @transform_0(%arg0: i32) -> (i32, i32, i32) {
    %c0_i32 = arith.constant 0 : i32
    %c0_i32_0 = arith.constant 0 : i32
    %c0_i32_1 = arith.constant 0 : i32
    return %arg0, %c0_i32, %c0_i32_0 : i32, i32, i32
  }
  func.func @transform_1(%arg0: i32) -> (i32, i32, i32) {
    %c0_i32 = arith.constant 0 : i32
    %c0_i32_0 = arith.constant 0 : i32
    %c0_i32_1 = arith.constant 0 : i32
    %c0_i32_2 = arith.constant 0 : i32
    return %c0_i32, %c0_i32_0, %c0_i32_1 : i32, i32, i32
  }
}

</mosaic_0001>

<llo_original>
// kernel: tpu_custom_call.1
$region0: #{tpu_custom_call.1}
  #allocation0 [shape = 'u32[]', space=smem, size = 0x4, offset = 0x4, fixed_abs, tag = 'smem constant byte address 0x4 - core index']
  #allocation1 [shape = 'u32[144,128]{1,0:T(1,128)}', space=vmem, size = 0x12000, scoped, tag = 'internal scratch']
  %s0 = inlined_call_operand.hbm [shape: f32[3,7,19], index: 0, kind: input, shape index: {}]
  %s1 = inlined_call_operand.vmem [shape: f32[1,7,19], index: 1, kind: output, shape index: {}]
  %s2 = sld [smem:[#allocation0]]
  $region22: #{tpu_custom_call.1} parent=0
    _
  %s4 = ssub.s32 1, %s2
  %s5 = scalar_select 0, %s4, %s2
  $region1: #{tpu_custom_call.1} parent=0
    #allocation2 [shape = 'u8[12288]{0}', space=vmem, size = 0x3000, scoped, tag = 'input window, operand 0, single buffered']
    #allocation3 [shape = 's32[1]{0}', space=sflag, size = 0x4, scoped, tag = 'scoped memory for tpu_custom_call.1']
    %6 = vsyncpa [#allocation3], 0
    // Predicated region
    $region2: #{tpu_custom_call.1} parent=1 // pred_check
      _
    $region3: #{tpu_custom_call.1} parent=1 // pred_check_branch
      %8 = sbr.rel (0) target = $region5
    $region4: #{tpu_custom_call.1} parent=1 // pred_region
      %s10 = ssub.s32 384, 384
      %11 = vsyncadd [#allocation3], %s10
      %s12 = sshll.u32 [#allocation2], 4
      %s13 = int_to_ptr.vmem [resolvable:$true] %s12
      %18 = dma.hbm_to_vmem [thread:$0]  %s0, 384, %s13, [#allocation3], 128, 128, 8
    $region5: #{tpu_custom_call.1} parent=1 // pred_fallthru
      _
    // Predicated region
    $region6: #{tpu_custom_call.1} parent=1 // pred_check
      _
    $region7: #{tpu_custom_call.1} parent=1 // pred_check_branch
      %20 = sbr.rel (0) target = $region9
    $region8: #{tpu_custom_call.1} parent=1 // pred_region
      %21 = dma.done [#allocation3], 384
    $region9: #{tpu_custom_call.1} parent=1 // pred_fallthru
      _
    %p22 = scmp.eq.s32.totalorder 0, 0
    // Predicated region
    $region10: #{tpu_custom_call.1} parent=1 // pred_check
      %p23 = pneg %p22
    $region11: #{tpu_custom_call.1} parent=1 // pred_check_branch
      %25 = sbr.rel (%p23) target = $region13
    $region12: #{tpu_custom_call.1} parent=1 // pred_region
      %vm26 = vcmask 153600
      %27 = vst.msk [vmem:[%s1] sm:$0x7f] %vm26, -inf
    $region13: #{tpu_custom_call.1} parent=1 // pred_fallthru
      _
    %v28 = vld [vmem:[#allocation2] sm:$0x7f]
    %v29 = vld [vmem:[#allocation2 + $0x8] sm:$0x7f]
    %v30 = vld [vmem:[#allocation2 + $0x10] sm:$0x7f]
    %vm31 = vcmask 153600
    %v32 = vsel %vm31, %v28, -inf
    %v33 = vsel %vm31, %v29, -inf
    %v34 = vsel %vm31, %v30, -inf
    %v35 = vmax.f32 %v32, %v33
    %v36 = vmax.f32 %v35, %v34
    %v37 = vld [vmem:[%s1] sm:$0x7f]
    %v38 = vmax.f32 %v37, %v36
    %39 = vst.msk [vmem:[%s1] sm:$0x7f] %vm31, %v38
    // Predicated region
    $region14: #{tpu_custom_call.1} parent=1 // pred_check
      _
    $region15: #{tpu_custom_call.1} parent=1 // pred_check_branch
      %41 = sbr.rel (0) target = $region17
    $region16: #{tpu_custom_call.1} parent=1 // pred_region
      _
    $region17: #{tpu_custom_call.1} parent=1 // pred_fallthru
      _
    // Predicated region
    $region18: #{tpu_custom_call.1} parent=1 // pred_check
      _
    $region19: #{tpu_custom_call.1} parent=1 // pred_check_branch
      %43 = sbr.rel (0) target = $region21
    $region20: #{tpu_custom_call.1} parent=1 // pred_region
      _
    $region21: #{tpu_custom_call.1} parent=1 // pred_fallthru
      _
    %44 = vsyncpa [#allocation3], 1

</llo_original>
